<compile_context>
chip_gen: v5e
topology: v5e:2x2
jax: 0.10.0
libtpu: 0.0.40
codegen_flags: <defaults>
</compile_context>

<pallas_src>
import jax
import jax.numpy as jnp
from jax.experimental import pallas as pl
from jax.experimental.pallas import tpu as pltpu


def actor_kernel(x_ref, w1_ref, w2_ref, w3_ref, b12_ref, tail_ref, o_ref):
    # Packed small tensors (static slices -> zero-cost views).
    b1 = b12_ref[0:1, :]
    b2 = b12_ref[1:2, :]
    b3 = tail_ref[0:1, :]
    scale = tail_ref[1:2, :]
    bias = tail_ref[2:3, :]

    cdt = w1_ref.dtype  # MXU-input dtype (bf16 by default)

    # Layer 1: Linear + ReLU (bf16 MXU inputs, f32 accumulation, f32 elementwise)
    h1 = jnp.dot(x_ref[...].astype(cdt), w1_ref[...],
                 preferred_element_type=jnp.float32)
    h1 = jnp.maximum(h1 + b1, 0.0)
    # Layer 2: Linear + ReLU
    h2 = jnp.dot(h1.astype(cdt), w2_ref[...],
                 preferred_element_type=jnp.float32)
    h2 = jnp.maximum(h2 + b2, 0.0)
    # Layer 3: Linear + Tanh
    a = jnp.dot(h2.astype(cdt), w3_ref[...],
                preferred_element_type=jnp.float32)
    a = jnp.tanh(a + b3)
    # Action rescale: a * action_scale + action_bias
    o_ref[...] = (a * scale + bias).astype(o_ref.dtype)


def actor_forward(x, params, *, batch_tile=512):
    """x: (B, obs_dim) f32. params: dict with bf16 weights + packed f32 biases."""
    w1, w2, w3 = params["w1"], params["w2"], params["w3"]
    b12, tail = params["b12"], params["tail"]

    B, obs_dim = x.shape
    hidden = w1.shape[1]
    act_dim = w3.shape[1]

    # Batch tile: large multiple of the 8-row sublane packing for big batches;
    # tiny batches collapse to a single grid step rounded up to 8 rows.
    TB = batch_tile if B >= batch_tile else ((B + 7) // 8) * 8
    n_tiles = pl.cdiv(B, TB)
    B_pad = n_tiles * TB
    if B_pad != B:
        x = jnp.pad(x, ((0, B_pad - B), (0, 0)))

    # Weights / packed biases: constant block index -> loaded once, stay
    # VMEM-resident across every grid step.
    def resident(arr):
        return pl.BlockSpec(arr.shape, lambda i, _nd=arr.ndim: (0,) * _nd)

    flops = 2 * B_pad * (obs_dim * hidden + hidden * hidden + hidden * act_dim)
    bytes_accessed = (x.size * x.dtype.itemsize
                      + sum(a.size * a.dtype.itemsize for a in (w1, w2, w3, b12, tail))
                      + B_pad * act_dim * 4)

    out = pl.pallas_call(
        actor_kernel,
        out_shape=jax.ShapeDtypeStruct((B_pad, act_dim), jnp.float32),
        grid=(n_tiles,),
        in_specs=[
            pl.BlockSpec((TB, obs_dim), lambda i: (i, 0)),   # x: batch-tiled
            resident(w1), resident(w2), resident(w3),
            resident(b12), resident(tail),
        ],
        out_specs=pl.BlockSpec((TB, act_dim), lambda i: (i, 0)),
        compiler_params=pltpu.CompilerParams(
            dimension_semantics=("parallel",),   # batch tiles shard across TCs on v7x
        ),
        cost_estimate=pl.CostEstimate(
            flops=flops,
            transcendentals=B_pad * act_dim,      # tanh
            bytes_accessed=bytes_accessed,
        ),
    )(x, w1, w2, w3, b12, tail)
    return out[:B]


def init_actor_params(key, obs_dim, act_dim, hidden=256,
                      action_high=None, action_low=None,
                      weights_dtype=jnp.bfloat16):
    """Init mimicking torch.nn.Linear default (uniform +-1/sqrt(fan_in)).

    Weights are stored transposed vs torch, i.e. (in_features, out_features),
    and cast to `weights_dtype` (bf16) for DMA/MXU efficiency. Biases and the
    action scale/bias stay f32 and are packed to cut tiny-DMA overhead.
    """
    ks = jax.random.split(key, 6)

    def linear(kw, kb, fan_in, fan_out):
        bound = 1.0 / jnp.sqrt(jnp.float32(fan_in))
        w = jax.random.uniform(kw, (fan_in, fan_out), jnp.float32, -bound, bound)
        b = jax.random.uniform(kb, (1, fan_out), jnp.float32, -bound, bound)
        return w, b

    w1, b1 = linear(ks[0], ks[1], obs_dim, hidden)
    w2, b2 = linear(ks[2], ks[3], hidden, hidden)
    w3, b3 = linear(ks[4], ks[5], hidden, act_dim)

    if action_high is None:
        action_high = jnp.full((act_dim,), 2.0, jnp.float32)
    if action_low is None:
        action_low = jnp.full((act_dim,), -2.0, jnp.float32)

    action_scale = ((action_high - action_low) / 2.0).reshape(1, act_dim).astype(jnp.float32)
    action_bias = ((action_high + action_low) / 2.0).reshape(1, act_dim).astype(jnp.float32)

    return {
        "w1": w1.astype(weights_dtype),
        "w2": w2.astype(weights_dtype),
        "w3": w3.astype(weights_dtype),
        "b12": jnp.concatenate([b1, b2], axis=0),                           # (2, hidden) f32
        "tail": jnp.concatenate([b3, action_scale, action_bias], axis=0),   # (3, act_dim) f32
    }


def actor_reference(x, p):
    """Pure-JAX reference applying the identical bf16 casts as the kernel."""
    cdt = p["w1"].dtype
    b1, b2 = p["b12"][0:1], p["b12"][1:2]
    b3, scale, bias = p["tail"][0:1], p["tail"][1:2], p["tail"][2:3]
    h1 = jnp.maximum(
        jnp.dot(x.astype(cdt), p["w1"], preferred_element_type=jnp.float32) + b1, 0.0)
    h2 = jnp.maximum(
        jnp.dot(h1.astype(cdt), p["w2"], preferred_element_type=jnp.float32) + b2, 0.0)
    a = jnp.tanh(
        jnp.dot(h2.astype(cdt), p["w3"], preferred_element_type=jnp.float32) + b3)
    return a * scale + bias


if __name__ == "__main__":
    key = jax.random.PRNGKey(0)
    k_param, k_x = jax.random.split(key)

    batch = 2
    obs_dim = 8      # single_observation_space_shape = (8,)
    act_dim = 4      # single_action_space_shape = (4,)
    hidden = 256     # default hidden width in the module

    params = init_actor_params(k_param, obs_dim, act_dim, hidden)
    x = jax.random.normal(k_x, (batch, obs_dim), jnp.float32)

    out = jax.block_until_ready(actor_forward(x, params))

    ref = actor_reference(x, params)
    assert out.shape == (batch, act_dim)
    assert jnp.allclose(out, ref, atol=1e-3, rtol=1e-3), "mismatch vs reference"

    print("KERNEL_OK")
</pallas_src>

<mosaic_0001>
module attributes {stable_mosaic.version = 11 : i64} {
  func.func @actor_kernel(%arg0: i32, %arg1: memref<8x8xf32, #tpu.memory_space<vmem>>, %arg2: memref<8x256xbf16, #tpu.memory_space<vmem>>, %arg3: memref<256x256xbf16, #tpu.memory_space<vmem>>, %arg4: memref<256x4xbf16, #tpu.memory_space<vmem>>, %arg5: memref<2x256xf32, #tpu.memory_space<vmem>>, %arg6: memref<3x4xf32, #tpu.memory_space<vmem>>, %arg7: memref<8x4xf32, #tpu.memory_space<vmem>>) attributes {dimension_semantics = [#tpu.dimension_semantics<parallel>], iteration_bounds = array<i64: 1>, scalar_prefetch = 0 : i64, scratch_operands = 0 : i64, tpu.core_type = #tpu.core_type<tc>, window_params = [{transform_indices = @transform_0, window_bounds = array<i64: 8, 8>}, {pipeline_mode = #tpu.pipeline_mode<synchronous>, transform_indices = @transform_1, window_bounds = array<i64: 8, 256>}, {pipeline_mode = #tpu.pipeline_mode<synchronous>, transform_indices = @transform_2, window_bounds = array<i64: 256, 256>}, {pipeline_mode = #tpu.pipeline_mode<synchronous>, transform_indices = @transform_3, window_bounds = array<i64: 256, 4>}, {pipeline_mode = #tpu.pipeline_mode<synchronous>, transform_indices = @transform_4, window_bounds = array<i64: 2, 256>}, {pipeline_mode = #tpu.pipeline_mode<synchronous>, transform_indices = @transform_5, window_bounds = array<i64: 3, 4>}, {transform_indices = @transform_6, window_bounds = array<i64: 8, 4>}]} {
    %c0 = arith.constant 0 : index
    %c0_0 = arith.constant 0 : index
    %0 = vector.load %arg5[%c0, %c0_0] : memref<2x256xf32, #tpu.memory_space<vmem>>, vector<1x256xf32>
    %c1 = arith.constant 1 : index
    %c0_1 = arith.constant 0 : index
    %1 = vector.load %arg5[%c1, %c0_1] : memref<2x256xf32, #tpu.memory_space<vmem>>, vector<1x256xf32>
    %c0_2 = arith.constant 0 : index
    %c0_3 = arith.constant 0 : index
    %2 = vector.load %arg6[%c0_2, %c0_3] : memref<3x4xf32, #tpu.memory_space<vmem>>, vector<1x4xf32>
    %c1_4 = arith.constant 1 : index
    %c0_5 = arith.constant 0 : index
    %3 = vector.load %arg6[%c1_4, %c0_5] : memref<3x4xf32, #tpu.memory_space<vmem>>, vector<1x4xf32>
    %c2 = arith.constant 2 : index
    %c0_6 = arith.constant 0 : index
    %4 = vector.load %arg6[%c2, %c0_6] : memref<3x4xf32, #tpu.memory_space<vmem>>, vector<1x4xf32>
    %c0_7 = arith.constant 0 : index
    %c0_8 = arith.constant 0 : index
    %5 = vector.load %arg1[%c0_7, %c0_8] : memref<8x8xf32, #tpu.memory_space<vmem>>, vector<8x8xf32>
    %6 = arith.truncf %5 : vector<8x8xf32> to vector<8x8xbf16>
    %c0_9 = arith.constant 0 : index
    %c0_10 = arith.constant 0 : index
    %7 = vector.load %arg2[%c0_9, %c0_10] : memref<8x256xbf16, #tpu.memory_space<vmem>>, vector<8x256xbf16>
    %cst = arith.constant dense<0.000000e+00> : vector<8x256xf32>
    %8 = tpu.matmul %6, %7, %cst {dimension_numbers = #tpu.dot_dimension_numbers<[1], [0], [0], [1], [0, 0, 1, 1], [], []>} : vector<8x8xbf16>, vector<8x256xbf16>, vector<8x256xf32> -> vector<8x256xf32>
    %9 = vector.broadcast %0 : vector<1x256xf32> to vector<8x256xf32>
    %10 = arith.addf %8, %9 : vector<8x256xf32>
    %cst_11 = arith.constant 0.000000e+00 : f32
    %11 = vector.broadcast %cst_11 : f32 to vector<8x256xf32>
    %12 = arith.maximumf %10, %11 : vector<8x256xf32>
    %13 = arith.truncf %12 : vector<8x256xf32> to vector<8x256xbf16>
    %c0_12 = arith.constant 0 : index
    %c0_13 = arith.constant 0 : index
    %14 = vector.load %arg3[%c0_12, %c0_13] : memref<256x256xbf16, #tpu.memory_space<vmem>>, vector<256x256xbf16>
    %cst_14 = arith.constant dense<0.000000e+00> : vector<8x256xf32>
    %15 = tpu.matmul %13, %14, %cst_14 {dimension_numbers = #tpu.dot_dimension_numbers<[1], [0], [0], [1], [0, 0, 1, 1], [], []>} : vector<8x256xbf16>, vector<256x256xbf16>, vector<8x256xf32> -> vector<8x256xf32>
    %16 = vector.broadcast %1 : vector<1x256xf32> to vector<8x256xf32>
    %17 = arith.addf %15, %16 : vector<8x256xf32>
    %cst_15 = arith.constant 0.000000e+00 : f32
    %18 = vector.broadcast %cst_15 : f32 to vector<8x256xf32>
    %19 = arith.maximumf %17, %18 : vector<8x256xf32>
    %20 = arith.truncf %19 : vector<8x256xf32> to vector<8x256xbf16>
    %c0_16 = arith.constant 0 : index
    %c0_17 = arith.constant 0 : index
    %21 = vector.load %arg4[%c0_16, %c0_17] : memref<256x4xbf16, #tpu.memory_space<vmem>>, vector<256x4xbf16>
    %cst_18 = arith.constant dense<0.000000e+00> : vector<8x4xf32>
    %22 = tpu.matmul %20, %21, %cst_18 {dimension_numbers = #tpu.dot_dimension_numbers<[1], [0], [0], [1], [0, 0, 1, 1], [], []>} : vector<8x256xbf16>, vector<256x4xbf16>, vector<8x4xf32> -> vector<8x4xf32>
    %23 = vector.broadcast %2 : vector<1x4xf32> to vector<8x4xf32>
    %24 = arith.addf %22, %23 : vector<8x4xf32>
    %25 = math.tanh %24 : vector<8x4xf32>
    %26 = vector.broadcast %3 : vector<1x4xf32> to vector<8x4xf32>
    %27 = arith.mulf %25, %26 : vector<8x4xf32>
    %28 = vector.broadcast %4 : vector<1x4xf32> to vector<8x4xf32>
    %29 = arith.addf %27, %28 : vector<8x4xf32>
    %c0_19 = arith.constant 0 : index
    %c0_20 = arith.constant 0 : index
    %30 = vector.load %arg7[%c0_19, %c0_20] : memref<8x4xf32, #tpu.memory_space<vmem>>, vector<8x4xf32>
    tpu.vector_store %arg7[%c0_19, %c0_20], %29 {strides = array<i32>} : memref<8x4xf32, #tpu.memory_space<vmem>>, vector<8x4xf32>,
    return
  }
  func.func @transform_0(%arg0: i32) -> (i32, i32) {
    %c0_i32 = arith.constant 0 : i32
    %c0_i32_0 = arith.constant 0 : i32
    return %arg0, %c0_i32 : i32, i32
  }
  func.func @transform_1(%arg0: i32) -> (i32, i32) {
    %c0_i32 = arith.constant 0 : i32
    %c0_i32_0 = arith.constant 0 : i32
    %c0_i32_1 = arith.constant 0 : i32
    return %c0_i32, %c0_i32_0 : i32, i32
  }
  func.func @transform_2(%arg0: i32) -> (i32, i32) {
    %c0_i32 = arith.constant 0 : i32
    %c0_i32_0 = arith.constant 0 : i32
    %c0_i32_1 = arith.constant 0 : i32
    return %c0_i32, %c0_i32_0 : i32, i32
  }
  func.func @transform_3(%arg0: i32) -> (i32, i32) {
    %c0_i32 = arith.constant 0 : i32
    %c0_i32_0 = arith.constant 0 : i32
    %c0_i32_1 = arith.constant 0 : i32
    return %c0_i32, %c0_i32_0 : i32, i32
  }
  func.func @transform_4(%arg0: i32) -> (i32, i32) {
    %c0_i32 = arith.constant 0 : i32
    %c0_i32_0 = arith.constant 0 : i32
    %c0_i32_1 = arith.constant 0 : i32
    return %c0_i32, %c0_i32_0 : i32, i32
  }
  func.func @transform_5(%arg0: i32) -> (i32, i32) {
    %c0_i32 = arith.constant 0 : i32
    %c0_i32_0 = arith.constant 0 : i32
    %c0_i32_1 = arith.constant 0 : i32
    return %c0_i32, %c0_i32_0 : i32, i32
  }
  func.func @transform_6(%arg0: i32) -> (i32, i32) {
    %c0_i32 = arith.constant 0 : i32
    %c0_i32_0 = arith.constant 0 : i32
    return %arg0, %c0_i32 : i32, i32
  }
}

</mosaic_0001>

<llo_original>
// kernel: tpu_custom_call.1
$region0: #{tpu_custom_call.1}
  #allocation0 [shape = 'u32[]', space=smem, size = 0x4, offset = 0x4, fixed_abs, tag = 'smem constant byte address 0x4 - core index']
  #allocation1 [shape = 'u32[72,128]{1,0:T(1,128)}', space=vmem, size = 0x9000, scoped, tag = 'internal scratch']
  %s0 = inlined_call_operand.vmem [shape: f32[8,8], index: 0, kind: input, shape index: {}]
  %s1 = inlined_call_operand.vmem [shape: bf16[8,256], index: 1, kind: input, shape index: {}]
  %s2 = inlined_call_operand.hbm [shape: bf16[256,256], index: 2, kind: input, shape index: {}]
  %s3 = inlined_call_operand.vmem [shape: bf16[256,4], index: 3, kind: input, shape index: {}]
  %s4 = inlined_call_operand.vmem [shape: f32[2,256], index: 4, kind: input, shape index: {}]
  %s5 = inlined_call_operand.vmem [shape: f32[3,4], index: 5, kind: input, shape index: {}]
  %s6 = inlined_call_operand.vmem [shape: f32[8,4], index: 6, kind: output, shape index: {}]
  %s7 = sld [smem:[#allocation0]]
  $region38: #{tpu_custom_call.1} parent=0
    _
  %s9 = ssub.s32 1, %s7
  %s10 = scalar_select 0, %s9, %s7
  $region1: #{tpu_custom_call.1} parent=0
    #allocation2 [shape = 'u8[131072]{0}', space=vmem, size = 0x20000, scoped, tag = 'input window, operand 2, single buffered']
    #allocation3 [shape = 's32[1]{0}', space=sflag, size = 0x4, scoped, tag = 'scoped memory for tpu_custom_call.1']
    %11 = vsyncpa [#allocation3], 0
    // Predicated region
    $region2: #{tpu_custom_call.1} parent=1 // pred_check
      _
    $region3: #{tpu_custom_call.1} parent=1 // pred_check_branch
      %13 = sbr.rel (0) target = $region5
    $region4: #{tpu_custom_call.1} parent=1 // pred_region
      _
    $region5: #{tpu_custom_call.1} parent=1 // pred_fallthru
      _
    // Predicated region
    $region6: #{tpu_custom_call.1} parent=1 // pred_check
      _
    $region7: #{tpu_custom_call.1} parent=1 // pred_check_branch
      %15 = sbr.rel (0) target = $region9
    $region8: #{tpu_custom_call.1} parent=1 // pred_region
      _
    $region9: #{tpu_custom_call.1} parent=1 // pred_fallthru
      _
    // Predicated region
    $region10: #{tpu_custom_call.1} parent=1 // pred_check
      _
    $region11: #{tpu_custom_call.1} parent=1 // pred_check_branch
      %17 = sbr.rel (0) target = $region13
    $region12: #{tpu_custom_call.1} parent=1 // pred_region
      %19 = vsyncadd [#allocation3], 0
      %s20 = sshll.u32 %s2, 4
      %s21 = int_to_ptr.hbm [resolvable:$true] %s20
      %s22 = sshll.u32 [#allocation2], 4
      %s23 = int_to_ptr.vmem [resolvable:$true] %s22
      %28 = dma.hbm_to_vmem [thread:$0]  %s21, 4096, %s23, [#allocation3], 128, 128, 8
    $region13: #{tpu_custom_call.1} parent=1 // pred_fallthru
      _
    // Predicated region
    $region14: #{tpu_custom_call.1} parent=1 // pred_check
      _
    $region15: #{tpu_custom_call.1} parent=1 // pred_check_branch
      %30 = sbr.rel (0) target = $region17
    $region16: #{tpu_custom_call.1} parent=1 // pred_region
      _
    $region17: #{tpu_custom_call.1} parent=1 // pred_fallthru
      _
    // Predicated region
    $region18: #{tpu_custom_call.1} parent=1 // pred_check
      _
    $region19: #{tpu_custom_call.1} parent=1 // pred_check_branch
      %32 = sbr.rel (0) target = $region21
    $region20: #{tpu_custom_call.1} parent=1 // pred_region
      _
    $region21: #{tpu_custom_call.1} parent=1 // pred_fallthru
      _
    // Predicated region
    $region22: #{tpu_custom_call.1} parent=1 // pred_check
      _
    $region23: #{tpu_custom_call.1} parent=1 // pred_check_branch
      %34 = sbr.rel (0) target = $region25
    $region24: #{tpu_custom_call.1} parent=1 // pred_region
      _
    $region25: #{tpu_custom_call.1} parent=1 // pred_fallthru
      _
    // Predicated region
    $region26: #{tpu_custom_call.1} parent=1 // pred_check
      _
    $region27: #{tpu_custom_call.1} parent=1 // pred_check_branch
      %36 = sbr.rel (0) target = $region29
    $region28: #{tpu_custom_call.1} parent=1 // pred_region
      %38 = dma.done [#allocation3], 4096
    $region29: #{tpu_custom_call.1} parent=1 // pred_fallthru
      _
    %v40 = vld [vmem:[%s4] ss:$2 sm:$0x3]
    %s41 = scalar_lea.vmem %s4, 1
    %v42 = vld [vmem:[%s41] ss:$2 sm:$0x3]
    %v43 = vld [vmem:[%s5] sm:$0x1]
    %v44 = vld [vmem:[%s5 + $0x1] sm:$0x1]
    %v45 = vld [vmem:[%s5 + $0x2] sm:$0x1]
    %v46 = vld [vmem:[%s0] sm:$0xff]
    %v47 = vpack.c.bf16 %v46, %v46
    %v48 = vld [vmem:[%s1] sm:$0xff]
    %v50 = vperm.slane %v40, 0
    %v51 = vperm.slane %v40, 1
    %v55 = vunpack.c.l.b16 %v48
    %v56 = vunpack.c.h.b16 %v48
    %v57 = vpack.c.b16 %v55, %v55
    %v58 = vpack.c.b16 %v56, %v56
    %vm59 = vcmask 64512
    %v61 = vsel %vm59, %v47, 0
    %vm63 = vcmask 1043456
    %v65 = vsel %vm63, %v57, 0
    %v68 = vsel %vm63, %v58, 0
    %70 = vmatpush.bf16.msra.mxu0 0
    %71 = vmatpush.bf16.msra.mxu0 0
    %72 = vmatpush.bf16.msra.mxu0 0
    %73 = vmatpush.bf16.msra.mxu0 0
    %74 = vmatpush.bf16.msra.mxu0 0
    %75 = vmatpush.bf16.msra.mxu0 0
    %76 = vmatpush.bf16.msra.mxu0 0
    %77 = vmatpush.bf16.msra.mxu0 %v65
    %78 = vmatmul.bf16.gmra.mxu0 %v61
    %v79 = vpop.f32.mrf.mxu0
    %v80 = vadd.f32 %v50, %v79
    %v81 = vpop.f32.mrf.mxu0
    %82 = vdwg.mxu0
    %83 = vmatpush.bf16.msra.mxu0 0
    %84 = vmatpush.bf16.msra.mxu0 0
    %85 = vmatpush.bf16.msra.mxu0 0
    %86 = vmatpush.bf16.msra.mxu0 0
    %87 = vmatpush.bf16.msra.mxu0 0
    %88 = vmatpush.bf16.msra.mxu0 0
    %89 = vmatpush.bf16.msra.mxu0 0
    %90 = vmatpush.bf16.msra.mxu0 %v68
    %91 = vmatmul.bf16.gmra.mxu0 %v61
    %v92 = vpop.f32.mrf.mxu0
    %v93 = vadd.f32 %v51, %v92
    %v94 = vpop.f32.mrf.mxu0
    %95 = vdwg.mxu0
    %v96 = vmax.f32 %v80, 0.0
    %v97 = vmax.f32 %v93, 0.0
    %v98 = vpack.c.bf16 %v96, %v96
    %v99 = vpack.c.bf16 %v97, %v97
    %v100 = vld [vmem:[#allocation2] sm:$0xff]
    %v101 = vld [vmem:[#allocation2 + $0x8] sm:$0xff]
    %v102 = vld [vmem:[#allocation2 + $0x10] sm:$0xff]
    %v103 = vld [vmem:[#allocation2 + $0x18] sm:$0xff]
    %v104 = vld [vmem:[#allocation2 + $0x20] sm:$0xff]
    %v105 = vld [vmem:[#allocation2 + $0x28] sm:$0xff]
    %v106 = vld [vmem:[#allocation2 + $0x30] sm:$0xff]
    %v107 = vld [vmem:[#allocation2 + $0x38] sm:$0xff]
    %v108 = vld [vmem:[#allocation2 + $0x40] sm:$0xff]
    %v109 = vld [vmem:[#allocation2 + $0x48] sm:$0xff]
    %v110 = vld [vmem:[#allocation2 + $0x50] sm:$0xff]
    %v111 = vld [vmem:[#allocation2 + $0x58] sm:$0xff]
    %v112 = vld [vmem:[#allocation2 + $0x60] sm:$0xff]
    %v113 = vld [vmem:[#allocation2 + $0x68] sm:$0xff]
    %v114 = vld [vmem:[#allocation2 + $0x70] sm:$0xff]
    %v115 = vld [vmem:[#allocation2 + $0x78] sm:$0xff]
    %v116 = vld [vmem:[#allocation2 + $0x80] sm:$0xff]
    %v117 = vld [vmem:[#allocation2 + $0x88] sm:$0xff]
    %v118 = vld [vmem:[#allocation2 + $0x90] sm:$0xff]
    %v119 = vld [vmem:[#allocation2 + $0x98] sm:$0xff]
    %v120 = vld [vmem:[#allocation2 + $0xa0] sm:$0xff]
    %v121 = vld [vmem:[#allocation2 + $0xa8] sm:$0xff]
    %v122 = vld [vmem:[#allocation2 + $0xb0] sm:$0xff]
    %v123 = vld [vmem:[#allocation2 + $0xb8] sm:$0xff]
    %v124 = vld [vmem:[#allocation2 + $0xc0] sm:$0xff]
    %v125 = vld [vmem:[#allocation2 + $0xc8] sm:$0xff]
    %v126 = vld [vmem:[#allocation2 + $0xd0] sm:$0xff]
    %v127 = vld [vmem:[#allocation2 + $0xd8] sm:$0xff]
    %v128 = vld [vmem:[#allocation2 + $0xe0] sm:$0xff]
    %v129 = vld [vmem:[#allocation2 + $0xe8] sm:$0xff]
    %v130 = vld [vmem:[#allocation2 + $0xf0] sm:$0xff]
    %v131 = vld [vmem:[#allocation2 + $0xf8] sm:$0xff]
    %v133 = vperm.slane %v42, 0
    %v134 = vperm.slane %v42, 1
    %v169 = vunpack.c.l.b16 %v100
    %v170 = vunpack.c.h.b16 %v100
    %v171 = vunpack.c.l.b16 %v101
    %v172 = vunpack.c.h.b16 %v101
    %v173 = vunpack.c.l.b16 %v102
    %v174 = vunpack.c.h.b16 %v102
    %v175 = vunpack.c.l.b16 %v103
    %v176 = vunpack.c.h.b16 %v103
    %v177 = vunpack.c.l.b16 %v104
    %v178 = vunpack.c.h.b16 %v104
    %v179 = vunpack.c.l.b16 %v105
    %v180 = vunpack.c.h.b16 %v105
    %v181 = vunpack.c.l.b16 %v106
    %v182 = vunpack.c.h.b16 %v106
    %v183 = vunpack.c.l.b16 %v107
    %v184 = vunpack.c.h.b16 %v107
    %v185 = vunpack.c.l.b16 %v108
    %v186 = vunpack.c.h.b16 %v108
    %v187 = vunpack.c.l.b16 %v109
    %v188 = vunpack.c.h.b16 %v109
    %v189 = vunpack.c.l.b16 %v110
    %v190 = vunpack.c.h.b16 %v110
    %v191 = vunpack.c.l.b16 %v111
    %v192 = vunpack.c.h.b16 %v111
    %v193 = vunpack.c.l.b16 %v112
    %v194 = vunpack.c.h.b16 %v112
    %v195 = vunpack.c.l.b16 %v113
    %v196 = vunpack.c.h.b16 %v113
    %v197 = vunpack.c.l.b16 %v114
    %v198 = vunpack.c.h.b16 %v114
    %v199 = vunpack.c.l.b16 %v115
    %v200 = vunpack.c.h.b16 %v115
    %v201 = vunpack.c.l.b16 %v116
    %v202 = vunpack.c.h.b16 %v116
    %v203 = vunpack.c.l.b16 %v117
    %v204 = vunpack.c.h.b16 %v117
    %v205 = vunpack.c.l.b16 %v118
    %v206 = vunpack.c.h.b16 %v118
    %v207 = vunpack.c.l.b16 %v119
    %v208 = vunpack.c.h.b16 %v119
    %v209 = vunpack.c.l.b16 %v120
    %v210 = vunpack.c.h.b16 %v120
    %v211 = vunpack.c.l.b16 %v121
    %v212 = vunpack.c.h.b16 %v121
    %v213 = vunpack.c.l.b16 %v122
    %v214 = vunpack.c.h.b16 %v122
    %v215 = vunpack.c.l.b16 %v123
    %v216 = vunpack.c.h.b16 %v123
    %v217 = vunpack.c.l.b16 %v124
    %v218 = vunpack.c.h.b16 %v124
    %v219 = vunpack.c.l.b16 %v125
    %v220 = vunpack.c.h.b16 %v125
    %v221 = vunpack.c.l.b16 %v126
    %v222 = vunpack.c.h.b16 %v126
    %v223 = vunpack.c.l.b16 %v127
    %v224 = vunpack.c.h.b16 %v127
    %v225 = vunpack.c.l.b16 %v128
    %v226 = vunpack.c.h.b16 %v128
    %v227 = vunpack.c.l.b16 %v129
    %v228 = vunpack.c.h.b16 %v129
    %v229 = vunpack.c.l.b16 %v130
    %v230 = vunpack.c.h.b16 %v130
    %v231 = vunpack.c.l.b16 %v131
    %v232 = vunpack.c.h.b16 %v131
    %v233 = vpack.c.b16 %v171, %v169
    %v234 = vpack.c.b16 %v172, %v170
    %v235 = vpack.c.b16 %v175, %v173
    %v236 = vpack.c.b16 %v176, %v174
    %v237 = vpack.c.b16 %v179, %v177
    %v238 = vpack.c.b16 %v180, %v178
    %v239 = vpack.c.b16 %v183, %v181
    %v240 = vpack.c.b16 %v184, %v182
    %v241 = vpack.c.b16 %v187, %v185
    %v242 = vpack.c.b16 %v188, %v186
    %v243 = vpack.c.b16 %v191, %v189
    %v244 = vpack.c.b16 %v192, %v190
    %v245 = vpack.c.b16 %v195, %v193
    %v246 = vpack.c.b16 %v196, %v194
    %v247 = vpack.c.b16 %v199, %v197
    %v248 = vpack.c.b16 %v200, %v198
    %v249 = vpack.c.b16 %v203, %v201
    %v250 = vpack.c.b16 %v204, %v202
    %v251 = vpack.c.b16 %v207, %v205
    %v252 = vpack.c.b16 %v208, %v206
    %v253 = vpack.c.b16 %v211, %v209
    %v254 = vpack.c.b16 %v212, %v210
    %v255 = vpack.c.b16 %v215, %v213
    %v256 = vpack.c.b16 %v216, %v214
    %v257 = vpack.c.b16 %v219, %v217
    %v258 = vpack.c.b16 %v220, %v218
    %v259 = vpack.c.b16 %v223, %v221
    %v260 = vpack.c.b16 %v224, %v222
    %v261 = vpack.c.b16 %v227, %v225
    %v262 = vpack.c.b16 %v228, %v226
    %v263 = vpack.c.b16 %v231, %v229
    %v264 = vpack.c.b16 %v232, %v230
    %297 = vmatpush.bf16.msra.mxu0 %v247
    %298 = vmatpush.bf16.msra.mxu0 %v245
    %299 = vmatpush.bf16.msra.mxu0 %v243
    %300 = vmatpush.bf16.msra.mxu0 %v241
    %301 = vmatpush.bf16.msra.mxu0 %v239
    %302 = vmatpush.bf16.msra.mxu0 %v237
    %303 = vmatpush.bf16.msra.mxu0 %v235
    %304 = vmatpush.bf16.msra.mxu0 %v233
    %305 = vmatmul.bf16.gmra.mxu0 %v98
    %v306 = vpop.f32.mrf.mxu0
    %v307 = vadd.f32 %v133, %v306
    %v308 = vpop.f32.mrf.mxu0
    %309 = vdwg.mxu0
    %310 = vmatpush.bf16.msra.mxu0 %v263
    %311 = vmatpush.bf16.msra.mxu0 %v261
    %312 = vmatpush.bf16.msra.mxu0 %v259
    %313 = vmatpush.bf16.msra.mxu0 %v257
    %314 = vmatpush.bf16.msra.mxu0 %v255
    %315 = vmatpush.bf16.msra.mxu0 %v253
    %316 = vmatpush.bf16.msra.mxu0 %v251
    %317 = vmatpush.bf16.msra.mxu0 %v249
    %318 = vmatmul.bf16.gmra.mxu0 %v99
    %v319 = vpop.f32.mrf.mxu0
    %v320 = vadd.f32 %v307, %v319
    %v321 = vpop.f32.mrf.mxu0
    %322 = vdwg.mxu0
    %323 = vmatpush.bf16.msra.mxu0 %v248
    %324 = vmatpush.bf16.msra.mxu0 %v246
    %325 = vmatpush.bf16.msra.mxu0 %v244
    %326 = vmatpush.bf16.msra.mxu0 %v242
    %327 = vmatpush.bf16.msra.mxu0 %v240
    %328 = vmatpush.bf16.msra.mxu0 %v238
    %329 = vmatpush.bf16.msra.mxu0 %v236
    %330 = vmatpush.bf16.msra.mxu0 %v234
    %331 = vmatmul.bf16.gmra.mxu0 %v98
    %v332 = vpop.f32.mrf.mxu0
    %v333 = vadd.f32 %v134, %v332
    %v334 = vpop.f32.mrf.mxu0
    %335 = vdwg.mxu0
    %336 = vmatpush.bf16.msra.mxu0 %v264
    %337 = vmatpush.bf16.msra.mxu0 %v262
    %338 = vmatpush.bf16.msra.mxu0 %v260
    %339 = vmatpush.bf16.msra.mxu0 %v258
    %340 = vmatpush.bf16.msra.mxu0 %v256
    %341 = vmatpush.bf16.msra.mxu0 %v254
    %342 = vmatpush.bf16.msra.mxu0 %v252
    %343 = vmatpush.bf16.msra.mxu0 %v250
    %344 = vmatmul.bf16.gmra.mxu0 %v99
    %v345 = vpop.f32.mrf.mxu0
    %v346 = vadd.f32 %v333, %v345
    %v347 = vpop.f32.mrf.mxu0
    %348 = vdwg.mxu0
    %v349 = vmax.f32 %v320, 0.0
    %v350 = vmax.f32 %v346, 0.0
    %v351 = vpack.c.bf16 %v349, %v349
    %v352 = vpack.c.bf16 %v350, %v350
    %v353 = vld [vmem:[%s3] sm:$0xf]
    %v354 = vld [vmem:[%s3 + $0x4] sm:$0xf]
    %v355 = vld [vmem:[%s3 + $0x8] sm:$0xf]
    %v356 = vld [vmem:[%s3 + $0xc] sm:$0xf]
    %v357 = vld [vmem:[%s3 + $0x10] sm:$0xf]
    %v358 = vld [vmem:[%s3 + $0x14] sm:$0xf]
    %v359 = vld [vmem:[%s3 + $0x18] sm:$0xf]
    %v360 = vld [vmem:[%s3 + $0x1c] sm:$0xf]
    %v361 = vld [vmem:[%s3 + $0x20] sm:$0xf]
    %v362 = vld [vmem:[%s3 + $0x24] sm:$0xf]
    %v363 = vld [vmem:[%s3 + $0x28] sm:$0xf]
    %v364 = vld [vmem:[%s3 + $0x2c] sm:$0xf]
    %v365 = vld [vmem:[%s3 + $0x30] sm:$0xf]
    %v366 = vld [vmem:[%s3 + $0x34] sm:$0xf]
    %v367 = vld [vmem:[%s3 + $0x38] sm:$0xf]
    %v368 = vld [vmem:[%s3 + $0x3c] sm:$0xf]
    %v369 = vld [vmem:[%s3 + $0x40] sm:$0xf]
    %v370 = vld [vmem:[%s3 + $0x44] sm:$0xf]
    %v371 = vld [vmem:[%s3 + $0x48] sm:$0xf]
    %v372 = vld [vmem:[%s3 + $0x4c] sm:$0xf]
    %v373 = vld [vmem:[%s3 + $0x50] sm:$0xf]
    %v374 = vld [vmem:[%s3 + $0x54] sm:$0xf]
    %v375 = vld [vmem:[%s3 + $0x58] sm:$0xf]
    %v376 = vld [vmem:[%s3 + $0x5c] sm:$0xf]
    %v377 = vld [vmem:[%s3 + $0x60] sm:$0xf]
    %v378 = vld [vmem:[%s3 + $0x64] sm:$0xf]
    %v379 = vld [vmem:[%s3 + $0x68] sm:$0xf]
    %v380 = vld [vmem:[%s3 + $0x6c] sm:$0xf]
    %v381 = vld [vmem:[%s3 + $0x70] sm:$0xf]
    %v382 = vld [vmem:[%s3 + $0x74] sm:$0xf]
    %v383 = vld [vmem:[%s3 + $0x78] sm:$0xf]
    %v384 = vld [vmem:[%s3 + $0x7c] sm:$0xf]
    %v385 = vperm.slane %v43, 0
    %v418 = vunpack.c.l.b16 %v353
    %v419 = vunpack.c.l.b16 %v354
    %v420 = vunpack.c.l.b16 %v355
    %v421 = vunpack.c.l.b16 %v356
    %v422 = vunpack.c.l.b16 %v357
    %v423 = vunpack.c.l.b16 %v358
    %v424 = vunpack.c.l.b16 %v359
    %v425 = vunpack.c.l.b16 %v360
    %v426 = vunpack.c.l.b16 %v361
    %v427 = vunpack.c.l.b16 %v362
    %v428 = vunpack.c.l.b16 %v363
    %v429 = vunpack.c.l.b16 %v364
    %v430 = vunpack.c.l.b16 %v365
    %v431 = vunpack.c.l.b16 %v366
    %v432 = vunpack.c.l.b16 %v367
    %v433 = vunpack.c.l.b16 %v368
    %v434 = vunpack.c.l.b16 %v369
    %v435 = vunpack.c.l.b16 %v370
    %v436 = vunpack.c.l.b16 %v371
    %v437 = vunpack.c.l.b16 %v372
    %v438 = vunpack.c.l.b16 %v373
    %v439 = vunpack.c.l.b16 %v374
    %v440 = vunpack.c.l.b16 %v375
    %v441 = vunpack.c.l.b16 %v376
    %v442 = vunpack.c.l.b16 %v377
    %v443 = vunpack.c.l.b16 %v378
    %v444 = vunpack.c.l.b16 %v379
    %v445 = vunpack.c.l.b16 %v380
    %v446 = vunpack.c.l.b16 %v381
    %v447 = vunpack.c.l.b16 %v382
    %v448 = vunpack.c.l.b16 %v383
    %v449 = vunpack.c.l.b16 %v384
    %v450 = vpack.c.b16 %v419, %v418
    %v451 = vpack.c.b16 %v421, %v420
    %v452 = vpack.c.b16 %v423, %v422
    %v453 = vpack.c.b16 %v425, %v424
    %v454 = vpack.c.b16 %v427, %v426
    %v455 = vpack.c.b16 %v429, %v428
    %v456 = vpack.c.b16 %v431, %v430
    %v457 = vpack.c.b16 %v433, %v432
    %v458 = vpack.c.b16 %v435, %v434
    %v459 = vpack.c.b16 %v437, %v436
    %v460 = vpack.c.b16 %v439, %v438
    %v461 = vpack.c.b16 %v441, %v440
    %v462 = vpack.c.b16 %v443, %v442
    %v463 = vpack.c.b16 %v445, %v444
    %v464 = vpack.c.b16 %v447, %v446
    %v465 = vpack.c.b16 %v449, %v448
    %482 = vmatpush.bf16.msra.mxu0 %v457
    %483 = vmatpush.bf16.msra.mxu0 %v456
    %484 = vmatpush.bf16.msra.mxu0 %v455
    %485 = vmatpush.bf16.msra.mxu0 %v454
    %486 = vmatpush.bf16.msra.mxu0 %v453
    %487 = vmatpush.bf16.msra.mxu0 %v452
    %488 = vmatpush.bf16.msra.mxu0 %v451
    %489 = vmatpush.bf16.msra.mxu0 %v450
    %490 = vmatmul.bf16.gmra.mxu0 %v351
    %v491 = vpop.f32.mrf.mxu0
    %v492 = vadd.f32 %v385, %v491
    %v493 = vpop.f32.mrf.mxu0
    %494 = vdwg.mxu0
    %495 = vmatpush.bf16.msra.mxu0 %v465
    %496 = vmatpush.bf16.msra.mxu0 %v464
    %497 = vmatpush.bf16.msra.mxu0 %v463
    %498 = vmatpush.bf16.msra.mxu0 %v462
    %499 = vmatpush.bf16.msra.mxu0 %v461
    %500 = vmatpush.bf16.msra.mxu0 %v460
    %501 = vmatpush.bf16.msra.mxu0 %v459
    %502 = vmatpush.bf16.msra.mxu0 %v458
    %503 = vmatmul.bf16.gmra.mxu0 %v352
    %v504 = vpop.f32.mrf.mxu0
    %v505 = vadd.f32 %v492, %v504
    %v506 = vpop.f32.mrf.mxu0
    %507 = vdwg.mxu0
    %v508 = vtanh.pop %v505
    %v509 = vperm.slane %v44, 0
    %v510 = vmul.f32 %v508, %v509
    %v511 = vperm.slane %v45, 0
    %v512 = vadd.f32 %v510, %v511
    %vm513 = vcmask 31744
    %514 = vst.msk [vmem:[%s6] sm:$0xff] %vm513, %v512
    // Predicated region
    $region30: #{tpu_custom_call.1} parent=1 // pred_check
      _
    $region31: #{tpu_custom_call.1} parent=1 // pred_check_branch
      %516 = sbr.rel (0) target = $region33
    $region32: #{tpu_custom_call.1} parent=1 // pred_region
      _
    $region33: #{tpu_custom_call.1} parent=1 // pred_fallthru
      _
    // Predicated region
    $region34: #{tpu_custom_call.1} parent=1 // pred_check
      _
    $region35: #{tpu_custom_call.1} parent=1 // pred_check_branch
      %518 = sbr.rel (0) target = $region37
    $region36: #{tpu_custom_call.1} parent=1 // pred_region
      _
    $region37: #{tpu_custom_call.1} parent=1 // pred_fallthru
      _
    %519 = vsyncpa [#allocation3], 1

</llo_original>
